<compile_context>
chip_gen: v7x
topology: tpu7x:2x2x1
jax: 0.10.0
libtpu: 0.0.40
codegen_flags: <defaults>
</compile_context>

<pallas_src>
import jax
import jax.numpy as jnp
from jax.experimental import pallas as pl
from jax.experimental.pallas import tpu as pltpu

OBS_DIM = 40     # concatenated normalized observation
ACT_DIM = 9      # TriFinger torque action
HIDDEN = 256
MAX_TB = 1024    # max batch rows per grid step (VMEM per step stays ~few MiB)
MIN_TB = 128     # don't split the grid below this many rows per step


def _round_up(n, m):
    return ((n + m - 1) // m) * m


def _cdiv(a, b):
    return (a + b - 1) // b


def actor_kernel(x_ref, w1_ref, b1_ref, w2_ref, b2_ref, w3_ref, b3_ref,
                 scale_ref, bias_ref, out_ref):
    """One batch tile of the whole MLP: ReLU x2, f32 tanh head, rescale."""
    # fc1 + ReLU: cast x to bf16 in-kernel; K=40 contraction (Mosaic pads /
    # masks the ragged contraction dim); f32 accumulation on the MXU.
    x = x_ref[...].astype(jnp.bfloat16)                          # (TB, 40)
    h1 = jnp.dot(x, w1_ref[...], preferred_element_type=jnp.float32)
    h1 = jnp.maximum(h1 + b1_ref[...], 0.0)                      # (TB, 256) f32

    # fc2 + ReLU
    h2 = jnp.dot(h1.astype(jnp.bfloat16), w2_ref[...],
                 preferred_element_type=jnp.float32)
    h2 = jnp.maximum(h2 + b2_ref[...], 0.0)                      # (TB, 256) f32

    # fc_mu + tanh, fully f32 (256x9 effective -> negligible cost, and the
    # action head is bounded at +/-0.397 so precision matters most here).
    mu = jnp.dot(h2, w3_ref[...], preferred_element_type=jnp.float32)
    mu = jnp.tanh(mu + b3_ref[...])                              # (TB, 9) f32

    # Action rescale; narrow (TB, ACT_DIM) store (14x less writeback than a
    # 128-wide f32 slab, and the consumer needs exactly this layout).
    out_ref[...] = mu * scale_ref[...] + bias_ref[...]


def prepare_params(w1, b1, w2, b2, w3, b3, action_scale, action_bias):
    """Cast the two big matmul operands to bf16; head and biases stay f32."""
    return (w1.astype(jnp.bfloat16), b1,
            w2.astype(jnp.bfloat16), b2,
            w3, b3, action_scale, action_bias)


@jax.jit
def actor_forward(x, w1, b1, w2, b2, w3, b3, scale, bias):
    """x: (B, OBS_DIM) f32. Returns (B, ACT_DIM) f32 actions."""
    B = x.shape[0]
    B8 = _round_up(max(B, 1), 8)

    # Grid-step count: enough steps to keep each tile <= MAX_TB rows, and at
    # least 2 steps (so ("parallel",) can shard the batch across both v7x
    # TensorCores) once the batch is big enough to be worth splitting.
    g = max(1, _cdiv(B8, MAX_TB))
    if B8 >= 2 * MIN_TB:
        g = max(g, 2)
    TB = _round_up(_cdiv(B8, g), 8)
    B_pad = g * TB           # wastes at most a few 8-row groups (e.g. 520->528)

    if B_pad != B:
        x = jnp.zeros((B_pad, OBS_DIM), x.dtype).at[:B].set(x)

    def resident(shape):
        # Full-array block, same block index every grid step -> DMA'd once,
        # stays resident in VMEM for the whole call.
        return pl.BlockSpec(shape, lambda i: (0,) * len(shape))

    out = pl.pallas_call(
        actor_kernel,
        out_shape=jax.ShapeDtypeStruct((B_pad, ACT_DIM), jnp.float32),
        grid=(g,),
        in_specs=[
            pl.BlockSpec((TB, OBS_DIM), lambda i: (i, 0)),   # x batch tile (f32)
            resident((OBS_DIM, HIDDEN)),                     # w1 (bf16)
            resident((1, HIDDEN)),                           # b1 (f32)
            resident((HIDDEN, HIDDEN)),                      # w2 (bf16)
            resident((1, HIDDEN)),                           # b2 (f32)
            resident((HIDDEN, ACT_DIM)),                     # w3 (f32)
            resident((1, ACT_DIM)),                          # b3 (f32)
            resident((1, ACT_DIM)),                          # action_scale
            resident((1, ACT_DIM)),                          # action_bias
        ],
        out_specs=pl.BlockSpec((TB, ACT_DIM), lambda i: (i, 0)),
        compiler_params=pltpu.CompilerParams(
            dimension_semantics=("parallel",)),              # batch across TCs
    )(x, w1, b1, w2, b2, w3, b3, scale, bias)

    return out[:B] if B_pad != B else out


def init_params(key):
    """Deterministic init mimicking torch.nn.Linear default U[-1/sqrt(fan_in), ...].

    Weights are stored as (in_features, out_features) = torch weight transposed."""
    ks = jax.random.split(key, 6)

    def linear(kw, kb, fan_in, fan_out):
        bound = 1.0 / jnp.sqrt(jnp.float32(fan_in))
        w = jax.random.uniform(kw, (fan_in, fan_out), jnp.float32, -bound, bound)
        b = jax.random.uniform(kb, (1, fan_out), jnp.float32, -bound, bound)
        return w, b

    w1, b1 = linear(ks[0], ks[1], OBS_DIM, HIDDEN)
    w2, b2 = linear(ks[2], ks[3], HIDDEN, HIDDEN)
    w3, b3 = linear(ks[4], ks[5], HIDDEN, ACT_DIM)

    # TriFinger action space: symmetric torque limits [-0.397, 0.397] per joint.
    act_high = jnp.full((1, ACT_DIM), 0.397, jnp.float32)
    act_low = -act_high
    action_scale = (act_high - act_low) / 2.0
    action_bias = (act_high + act_low) / 2.0
    return w1, b1, w2, b2, w3, b3, action_scale, action_bias


def actor_reference(x, w1, b1, w2, b2, w3, b3, scale, bias):
    """Pure-JAX f32 reference of the PyTorch forward."""
    h1 = jax.nn.relu(x @ w1 + b1)
    h2 = jax.nn.relu(h1 @ w2 + b2)
    mu = jnp.tanh(h2 @ w3 + b3)
    return mu * scale + bias


if __name__ == "__main__":
    key = jax.random.PRNGKey(0)
    k_params, k_x = jax.random.split(key)

    raw_params = init_params(k_params)
    kernel_params = prepare_params(*raw_params)

    # Small (inference-style) batch: single grid step, TB == 8.
    batch = 8
    x = jax.random.normal(k_x, (batch, OBS_DIM), jnp.float32)
    out = jax.block_until_ready(actor_forward(x, *kernel_params))
    ref = actor_reference(x, *raw_params)
    assert out.shape == (batch, ACT_DIM)
    # bf16 fc1/fc2 operands vs f32 reference; f32 head keeps this tight.
    assert jnp.allclose(out, ref, atol=2e-2, rtol=2e-2), "mismatch vs reference (B=8)"

    # Awkward larger batch: 2 grid steps (TB=264), only 8 padded rows.
    x2 = jax.random.normal(jax.random.PRNGKey(1), (520, OBS_DIM), jnp.float32)
    out2 = jax.block_until_ready(actor_forward(x2, *kernel_params))
    ref2 = actor_reference(x2, *raw_params)
    assert out2.shape == (520, ACT_DIM)
    assert jnp.allclose(out2, ref2, atol=2e-2, rtol=2e-2), "mismatch vs reference (B=520)"

    print("KERNEL_OK")
</pallas_src>

<mosaic_0001>
module attributes {stable_mosaic.version = 11 : i64} {
  func.func @actor_kernel(%arg0: i32, %arg1: memref<8x40xf32, #tpu.memory_space<vmem>>, %arg2: memref<40x256xbf16, #tpu.memory_space<vmem>>, %arg3: memref<1x256xf32, #tpu.memory_space<vmem>>, %arg4: memref<256x256xbf16, #tpu.memory_space<vmem>>, %arg5: memref<1x256xf32, #tpu.memory_space<vmem>>, %arg6: memref<256x9xf32, #tpu.memory_space<vmem>>, %arg7: memref<1x9xf32, #tpu.memory_space<vmem>>, %arg8: memref<1x9xf32, #tpu.memory_space<vmem>>, %arg9: memref<1x9xf32, #tpu.memory_space<vmem>>, %arg10: memref<8x9xf32, #tpu.memory_space<vmem>>) attributes {dimension_semantics = [#tpu.dimension_semantics<parallel>], iteration_bounds = array<i64: 1>, scalar_prefetch = 0 : i64, scratch_operands = 0 : i64, tpu.core_type = #tpu.core_type<tc>, window_params = [{transform_indices = @transform_0, window_bounds = array<i64: 8, 40>}, {pipeline_mode = #tpu.pipeline_mode<synchronous>, transform_indices = @transform_1, window_bounds = array<i64: 40, 256>}, {pipeline_mode = #tpu.pipeline_mode<synchronous>, transform_indices = @transform_2, window_bounds = array<i64: 1, 256>}, {pipeline_mode = #tpu.pipeline_mode<synchronous>, transform_indices = @transform_3, window_bounds = array<i64: 256, 256>}, {pipeline_mode = #tpu.pipeline_mode<synchronous>, transform_indices = @transform_4, window_bounds = array<i64: 1, 256>}, {pipeline_mode = #tpu.pipeline_mode<synchronous>, transform_indices = @transform_5, window_bounds = array<i64: 256, 9>}, {pipeline_mode = #tpu.pipeline_mode<synchronous>, transform_indices = @transform_6, window_bounds = array<i64: 1, 9>}, {pipeline_mode = #tpu.pipeline_mode<synchronous>, transform_indices = @transform_7, window_bounds = array<i64: 1, 9>}, {pipeline_mode = #tpu.pipeline_mode<synchronous>, transform_indices = @transform_8, window_bounds = array<i64: 1, 9>}, {transform_indices = @transform_9, window_bounds = array<i64: 8, 9>}]} {
    %c0 = arith.constant 0 : index
    %c0_0 = arith.constant 0 : index
    %0 = vector.load %arg1[%c0, %c0_0] : memref<8x40xf32, #tpu.memory_space<vmem>>, vector<8x40xf32>
    %1 = arith.truncf %0 : vector<8x40xf32> to vector<8x40xbf16>
    %c0_1 = arith.constant 0 : index
    %c0_2 = arith.constant 0 : index
    %2 = vector.load %arg2[%c0_1, %c0_2] : memref<40x256xbf16, #tpu.memory_space<vmem>>, vector<40x256xbf16>
    %cst = arith.constant dense<0.000000e+00> : vector<8x256xf32>
    %3 = tpu.matmul %1, %2, %cst {dimension_numbers = #tpu.dot_dimension_numbers<[1], [0], [0], [1], [0, 0, 1, 1], [], []>} : vector<8x40xbf16>, vector<40x256xbf16>, vector<8x256xf32> -> vector<8x256xf32>
    %c0_3 = arith.constant 0 : index
    %c0_4 = arith.constant 0 : index
    %4 = vector.load %arg3[%c0_3, %c0_4] : memref<1x256xf32, #tpu.memory_space<vmem>>, vector<1x256xf32>
    %5 = vector.broadcast %4 : vector<1x256xf32> to vector<8x256xf32>
    %6 = arith.addf %3, %5 : vector<8x256xf32>
    %cst_5 = arith.constant 0.000000e+00 : f32
    %7 = vector.broadcast %cst_5 : f32 to vector<8x256xf32>
    %8 = arith.maximumf %6, %7 : vector<8x256xf32>
    %9 = arith.truncf %8 : vector<8x256xf32> to vector<8x256xbf16>
    %c0_6 = arith.constant 0 : index
    %c0_7 = arith.constant 0 : index
    %10 = vector.load %arg4[%c0_6, %c0_7] : memref<256x256xbf16, #tpu.memory_space<vmem>>, vector<256x256xbf16>
    %cst_8 = arith.constant dense<0.000000e+00> : vector<8x256xf32>
    %11 = tpu.matmul %9, %10, %cst_8 {dimension_numbers = #tpu.dot_dimension_numbers<[1], [0], [0], [1], [0, 0, 1, 1], [], []>} : vector<8x256xbf16>, vector<256x256xbf16>, vector<8x256xf32> -> vector<8x256xf32>
    %c0_9 = arith.constant 0 : index
    %c0_10 = arith.constant 0 : index
    %12 = vector.load %arg5[%c0_9, %c0_10] : memref<1x256xf32, #tpu.memory_space<vmem>>, vector<1x256xf32>
    %13 = vector.broadcast %12 : vector<1x256xf32> to vector<8x256xf32>
    %14 = arith.addf %11, %13 : vector<8x256xf32>
    %cst_11 = arith.constant 0.000000e+00 : f32
    %15 = vector.broadcast %cst_11 : f32 to vector<8x256xf32>
    %16 = arith.maximumf %14, %15 : vector<8x256xf32>
    %c0_12 = arith.constant 0 : index
    %c0_13 = arith.constant 0 : index
    %17 = vector.load %arg6[%c0_12, %c0_13] : memref<256x9xf32, #tpu.memory_space<vmem>>, vector<256x9xf32>
    %cst_14 = arith.constant dense<0.000000e+00> : vector<8x9xf32>
    %18 = tpu.matmul %16, %17, %cst_14 {dimension_numbers = #tpu.dot_dimension_numbers<[1], [0], [0], [1], [0, 0, 1, 1], [], []>} : vector<8x256xf32>, vector<256x9xf32>, vector<8x9xf32> -> vector<8x9xf32>
    %c0_15 = arith.constant 0 : index
    %c0_16 = arith.constant 0 : index
    %19 = vector.load %arg7[%c0_15, %c0_16] : memref<1x9xf32, #tpu.memory_space<vmem>>, vector<1x9xf32>
    %20 = vector.broadcast %19 : vector<1x9xf32> to vector<8x9xf32>
    %21 = arith.addf %18, %20 : vector<8x9xf32>
    %22 = math.tanh %21 : vector<8x9xf32>
    %c0_17 = arith.constant 0 : index
    %c0_18 = arith.constant 0 : index
    %23 = vector.load %arg8[%c0_17, %c0_18] : memref<1x9xf32, #tpu.memory_space<vmem>>, vector<1x9xf32>
    %24 = vector.broadcast %23 : vector<1x9xf32> to vector<8x9xf32>
    %25 = arith.mulf %22, %24 : vector<8x9xf32>
    %c0_19 = arith.constant 0 : index
    %c0_20 = arith.constant 0 : index
    %26 = vector.load %arg9[%c0_19, %c0_20] : memref<1x9xf32, #tpu.memory_space<vmem>>, vector<1x9xf32>
    %27 = vector.broadcast %26 : vector<1x9xf32> to vector<8x9xf32>
    %28 = arith.addf %25, %27 : vector<8x9xf32>
    %c0_21 = arith.constant 0 : index
    %c0_22 = arith.constant 0 : index
    %29 = vector.load %arg10[%c0_21, %c0_22] : memref<8x9xf32, #tpu.memory_space<vmem>>, vector<8x9xf32>
    tpu.vector_store %arg10[%c0_21, %c0_22], %28 {strides = array<i32>} : memref<8x9xf32, #tpu.memory_space<vmem>>, vector<8x9xf32>,
    return
  }
  func.func @transform_0(%arg0: i32) -> (i32, i32) {
    %c0_i32 = arith.constant 0 : i32
    %c0_i32_0 = arith.constant 0 : i32
    return %arg0, %c0_i32 : i32, i32
  }
  func.func @transform_1(%arg0: i32) -> (i32, i32) {
    %c0_i32 = arith.constant 0 : i32
    %c0_i32_0 = arith.constant 0 : i32
    %c0_i32_1 = arith.constant 0 : i32
    return %c0_i32, %c0_i32_0 : i32, i32
  }
  func.func @transform_2(%arg0: i32) -> (i32, i32) {
    %c0_i32 = arith.constant 0 : i32
    %c0_i32_0 = arith.constant 0 : i32
    %c0_i32_1 = arith.constant 0 : i32
    return %c0_i32, %c0_i32_0 : i32, i32
  }
  func.func @transform_3(%arg0: i32) -> (i32, i32) {
    %c0_i32 = arith.constant 0 : i32
    %c0_i32_0 = arith.constant 0 : i32
    %c0_i32_1 = arith.constant 0 : i32
    return %c0_i32, %c0_i32_0 : i32, i32
  }
  func.func @transform_4(%arg0: i32) -> (i32, i32) {
    %c0_i32 = arith.constant 0 : i32
    %c0_i32_0 = arith.constant 0 : i32
    %c0_i32_1 = arith.constant 0 : i32
    return %c0_i32, %c0_i32_0 : i32, i32
  }
  func.func @transform_5(%arg0: i32) -> (i32, i32) {
    %c0_i32 = arith.constant 0 : i32
    %c0_i32_0 = arith.constant 0 : i32
    %c0_i32_1 = arith.constant 0 : i32
    return %c0_i32, %c0_i32_0 : i32, i32
  }
  func.func @transform_6(%arg0: i32) -> (i32, i32) {
    %c0_i32 = arith.constant 0 : i32
    %c0_i32_0 = arith.constant 0 : i32
    %c0_i32_1 = arith.constant 0 : i32
    return %c0_i32, %c0_i32_0 : i32, i32
  }
  func.func @transform_7(%arg0: i32) -> (i32, i32) {
    %c0_i32 = arith.constant 0 : i32
    %c0_i32_0 = arith.constant 0 : i32
    %c0_i32_1 = arith.constant 0 : i32
    return %c0_i32, %c0_i32_0 : i32, i32
  }
  func.func @transform_8(%arg0: i32) -> (i32, i32) {
    %c0_i32 = arith.constant 0 : i32
    %c0_i32_0 = arith.constant 0 : i32
    %c0_i32_1 = arith.constant 0 : i32
    return %c0_i32, %c0_i32_0 : i32, i32
  }
  func.func @transform_9(%arg0: i32) -> (i32, i32) {
    %c0_i32 = arith.constant 0 : i32
    %c0_i32_0 = arith.constant 0 : i32
    return %arg0, %c0_i32 : i32, i32
  }
}

</mosaic_0001>

<llo_original>
// kernel: actor_forward.1
$region0: #{actor_forward.1}
  #allocation0 [shape = 'u32[]', space=smem, size = 0x4, offset = 0x4, fixed_abs, tag = 'smem constant byte address 0x4 - core index']
  #allocation1 [shape = 'u32[144,128]{1,0:T(1,128)}', space=vmem, size = 0x12000, scoped, tag = 'internal scratch']
  %s0 = inlined_call_operand.hbm [shape: f32[8,40], index: 0, kind: input, shape index: {}]
  %s1 = inlined_call_operand.vmem [shape: bf16[40,256], index: 1, kind: input, shape index: {}]
  %s2 = inlined_call_operand.vmem [shape: f32[1,256], index: 2, kind: input, shape index: {}]
  %s3 = inlined_call_operand.vmem [shape: bf16[256,256], index: 3, kind: input, shape index: {}]
  %s4 = inlined_call_operand.vmem [shape: f32[1,256], index: 4, kind: input, shape index: {}]
  %s5 = inlined_call_operand.vmem [shape: f32[256,9], index: 5, kind: input, shape index: {}]
  %s6 = inlined_call_operand.vmem [shape: f32[1,9], index: 6, kind: input, shape index: {}]
  %s7 = inlined_call_operand.vmem [shape: f32[1,9], index: 7, kind: input, shape index: {}]
  %s8 = inlined_call_operand.vmem [shape: f32[1,9], index: 8, kind: input, shape index: {}]
  %s9 = inlined_call_operand.hbm [shape: f32[8,9], index: 9, kind: output, shape index: {}]
  %s10 = sld [smem:[#allocation0]]
  $region50: #{actor_forward.1} parent=0
    _
  %s12 = ssub.s32 1, %s10
  %s13 = scalar_select 0, %s12, %s10
  $region1: #{actor_forward.1} parent=0
    #allocation2 [shape = 'u8[4096]{0}', space=vmem, size = 0x1000, scoped, tag = 'input window, operand 0, single buffered']
    #allocation3 [shape = 's32[1]{0}', space=sflag, size = 0x4, scoped, tag = 'scoped memory for actor_forward.1']
    #allocation4 [shape = 's32[1]{0}', space=sflag, size = 0x4, scoped, tag = 'scoped memory for actor_forward.1']
    #allocation5 [shape = 'u8[4096]{0}', space=vmem, size = 0x1000, scoped, tag = 'output window, operand 0, single buffered']
    %14 = vsyncpa [#allocation3], 0
    %15 = vsyncpa [#allocation4], 0
    // Predicated region
    $region2: #{actor_forward.1} parent=1 // pred_check
      _
    $region3: #{actor_forward.1} parent=1 // pred_check_branch
      %17 = sbr.rel (0) target = $region5
    $region4: #{actor_forward.1} parent=1 // pred_region
      %s19 = ssub.s32 128, 128
      %20 = vsyncadd [#allocation3], %s19
      %s22 = sshll.u32 [#allocation2], 4
      %s23 = int_to_ptr.vmem [resolvable:$true] %s22
      %25 = dma.hbm_to_vmem [thread:$0]  %s0, 128, %s23, [#allocation3]
    $region5: #{actor_forward.1} parent=1 // pred_fallthru
      _
    // Predicated region
    $region6: #{actor_forward.1} parent=1 // pred_check
      _
    $region7: #{actor_forward.1} parent=1 // pred_check_branch
      %27 = sbr.rel (0) target = $region9
    $region8: #{actor_forward.1} parent=1 // pred_region
      _
    $region9: #{actor_forward.1} parent=1 // pred_fallthru
      _
    // Predicated region
    $region10: #{actor_forward.1} parent=1 // pred_check
      _
    $region11: #{actor_forward.1} parent=1 // pred_check_branch
      %29 = sbr.rel (0) target = $region13
    $region12: #{actor_forward.1} parent=1 // pred_region
      _
    $region13: #{actor_forward.1} parent=1 // pred_fallthru
      _
    // Predicated region
    $region14: #{actor_forward.1} parent=1 // pred_check
      _
    $region15: #{actor_forward.1} parent=1 // pred_check_branch
      %31 = sbr.rel (0) target = $region17
    $region16: #{actor_forward.1} parent=1 // pred_region
      _
    $region17: #{actor_forward.1} parent=1 // pred_fallthru
      _
    // Predicated region
    $region18: #{actor_forward.1} parent=1 // pred_check
      _
    $region19: #{actor_forward.1} parent=1 // pred_check_branch
      %33 = sbr.rel (0) target = $region21
    $region20: #{actor_forward.1} parent=1 // pred_region
      _
    $region21: #{actor_forward.1} parent=1 // pred_fallthru
      _
    // Predicated region
    $region22: #{actor_forward.1} parent=1 // pred_check
      _
    $region23: #{actor_forward.1} parent=1 // pred_check_branch
      %35 = sbr.rel (0) target = $region25
    $region24: #{actor_forward.1} parent=1 // pred_region
      _
    $region25: #{actor_forward.1} parent=1 // pred_fallthru
      _
    // Predicated region
    $region26: #{actor_forward.1} parent=1 // pred_check
      _
    $region27: #{actor_forward.1} parent=1 // pred_check_branch
      %37 = sbr.rel (0) target = $region29
    $region28: #{actor_forward.1} parent=1 // pred_region
      _
    $region29: #{actor_forward.1} parent=1 // pred_fallthru
      _
    // Predicated region
    $region30: #{actor_forward.1} parent=1 // pred_check
      _
    $region31: #{actor_forward.1} parent=1 // pred_check_branch
      %39 = sbr.rel (0) target = $region33
    $region32: #{actor_forward.1} parent=1 // pred_region
      _
    $region33: #{actor_forward.1} parent=1 // pred_fallthru
      _
    // Predicated region
    $region34: #{actor_forward.1} parent=1 // pred_check
      _
    $region35: #{actor_forward.1} parent=1 // pred_check_branch
      %41 = sbr.rel (0) target = $region37
    $region36: #{actor_forward.1} parent=1 // pred_region
      _
    $region37: #{actor_forward.1} parent=1 // pred_fallthru
      _
    // Predicated region
    $region38: #{actor_forward.1} parent=1 // pred_check
      _
    $region39: #{actor_forward.1} parent=1 // pred_check_branch
      %43 = sbr.rel (0) target = $region41
    $region40: #{actor_forward.1} parent=1 // pred_region
      %44 = dma.done [#allocation3], 128
    $region41: #{actor_forward.1} parent=1 // pred_fallthru
      _
    %v46 = vld [vmem:[#allocation2] sm:$0xff]
    %v47 = vpack.c.bf16 %v46, %v46
    %v48 = vld [vmem:[%s1] sm:$0xff]
    %v49 = vld [vmem:[%s1 + $0x8] sm:$0xff]
    %v50 = vld [vmem:[%s1 + $0x10] sm:$0xff]
    %v51 = vld [vmem:[%s1 + $0x18] sm:$0xff]
    %v52 = vld [vmem:[%s1 + $0x20] sm:$0xff]
    %v53 = vld [vmem:[%s2] sm:$0x3]
    %v55 = vlaneseq
    %v56 = vshrl.u32 %v55, 7
    %v57 = vsub.s32 0, %v56
    %v58 = vrot.slane %v53, %v57
    %v59 = vlaneseq
    %v60 = vshrl.u32 %v59, 7
    %v61 = vsub.s32 1, %v60
    %v62 = vrot.slane %v53, %v61
    %v70 = vunpack.c.l.b16 %v48
    %v71 = vunpack.c.h.b16 %v48
    %v72 = vunpack.c.l.b16 %v49
    %v73 = vunpack.c.h.b16 %v49
    %v74 = vunpack.c.l.b16 %v50
    %v75 = vunpack.c.h.b16 %v50
    %v76 = vunpack.c.l.b16 %v51
    %v77 = vunpack.c.h.b16 %v51
    %v78 = vunpack.c.l.b16 %v52
    %v79 = vunpack.c.h.b16 %v52
    %v80 = vpack.c.b16 %v72, %v70
    %v81 = vpack.c.b16 %v73, %v71
    %v82 = vpack.c.b16 %v76, %v74
    %v83 = vpack.c.b16 %v77, %v75
    %v84 = vpack.c.b16 %v78, %v78
    %v85 = vpack.c.b16 %v79, %v79
    %vm90 = vcmask 326656
    %v92 = vsel %vm90, %v47, 0
    %vm94 = vcmask 1043456
    %v96 = vsel %vm94, %v84, 0
    %v99 = vsel %vm94, %v85, 0
    %101 = vmatprep.subr.bf16.mxu0 %v81
    %102 = vmatpush1.bf16.msra.mxu0 %v80
    %103 = vmatprep.subr.bf16.mxu0 %v83
    %104 = vmatpush1.bf16.msra.mxu0 %v82
    %105 = vmatprep.subr.bf16.mxu0 %v99
    %106 = vmatpush1.bf16.msra.mxu0 %v96
    %107 = vmatprep.subr.bf16.mxu0 0
    %108 = vmatpush1.bf16.msra.mxu0 0
    %109 = vmatprep.subr.bf16.mxu0 0
    %110 = vmatpush1.bf16.msra.mxu0 0
    %111 = vmatprep.subr.bf16.mxu0 0
    %112 = vmatpush1.bf16.msra.mxu0 0
    %113 = vmatprep.subr.bf16.mxu0 0
    %114 = vmatpush1.bf16.msra.mxu0 0
    %115 = vmatprep.subr.bf16.mxu0 0
    %116 = vmatpush1.bf16.msra.mxu0 0
    %117 = vmatprep.subr.bf16.mxu0 0
    %118 = vmatpush1.bf16.msra.mxu0 0
    %119 = vmatprep.subr.bf16.mxu0 0
    %120 = vmatpush1.bf16.msra.mxu0 0
    %121 = vmatprep.subr.bf16.mxu0 0
    %122 = vmatpush1.bf16.msra.mxu0 0
    %123 = vmatprep.subr.bf16.mxu0 0
    %124 = vmatpush1.bf16.msra.mxu0 0
    %125 = vmatprep.subr.bf16.mxu0 0
    %126 = vmatpush1.bf16.msra.mxu0 0
    %127 = vmatprep.subr.bf16.mxu0 0
    %128 = vmatpush1.bf16.msra.mxu0 0
    %129 = vmatprep.subr.bf16.mxu0 0
    %130 = vmatpush1.bf16.msra.mxu0 0
    %131 = vmatprep.subr.bf16.mxu0 0
    %132 = vmatpush1.bf16.msra.mxu0 0
    %133 = vmatprep.mubr.bf16.mxu0 0
    %134 = vmatmul.mubr.bf16.gmra.mrb[0].mxu0 %v92
    %v135 = vpop.f32.mrb[0].mxu0
    %v136 = vadd.f32 %v58, %v135
    %v137 = vpop.f32.mrb[0].mxu0
    %v138 = vadd.f32 %v62, %v137
    %v139 = vpop.f32.mrb[0].mxu0
    %v140 = vpop.f32.mrb[0].mxu0
    %141 = vdwg.mxu0
    %v142 = vmax.f32 %v136, 0.0
    %v143 = vmax.f32 %v138, 0.0
    %v144 = vpack.c.bf16 %v142, %v142
    %v145 = vpack.c.bf16 %v143, %v143
    %v146 = vld [vmem:[%s3] sm:$0xff]
    %v147 = vld [vmem:[%s3 + $0x8] sm:$0xff]
    %v148 = vld [vmem:[%s3 + $0x10] sm:$0xff]
    %v149 = vld [vmem:[%s3 + $0x18] sm:$0xff]
    %v150 = vld [vmem:[%s3 + $0x20] sm:$0xff]
    %v151 = vld [vmem:[%s3 + $0x28] sm:$0xff]
    %v152 = vld [vmem:[%s3 + $0x30] sm:$0xff]
    %v153 = vld [vmem:[%s3 + $0x38] sm:$0xff]
    %v154 = vld [vmem:[%s3 + $0x40] sm:$0xff]
    %v155 = vld [vmem:[%s3 + $0x48] sm:$0xff]
    %v156 = vld [vmem:[%s3 + $0x50] sm:$0xff]
    %v157 = vld [vmem:[%s3 + $0x58] sm:$0xff]
    %v158 = vld [vmem:[%s3 + $0x60] sm:$0xff]
    %v159 = vld [vmem:[%s3 + $0x68] sm:$0xff]
    %v160 = vld [vmem:[%s3 + $0x70] sm:$0xff]
    %v161 = vld [vmem:[%s3 + $0x78] sm:$0xff]
    %v162 = vld [vmem:[%s3 + $0x80] sm:$0xff]
    %v163 = vld [vmem:[%s3 + $0x88] sm:$0xff]
    %v164 = vld [vmem:[%s3 + $0x90] sm:$0xff]
    %v165 = vld [vmem:[%s3 + $0x98] sm:$0xff]
    %v166 = vld [vmem:[%s3 + $0xa0] sm:$0xff]
    %v167 = vld [vmem:[%s3 + $0xa8] sm:$0xff]
    %v168 = vld [vmem:[%s3 + $0xb0] sm:$0xff]
    %v169 = vld [vmem:[%s3 + $0xb8] sm:$0xff]
    %v170 = vld [vmem:[%s3 + $0xc0] sm:$0xff]
    %v171 = vld [vmem:[%s3 + $0xc8] sm:$0xff]
    %v172 = vld [vmem:[%s3 + $0xd0] sm:$0xff]
    %v173 = vld [vmem:[%s3 + $0xd8] sm:$0xff]
    %v174 = vld [vmem:[%s3 + $0xe0] sm:$0xff]
    %v175 = vld [vmem:[%s3 + $0xe8] sm:$0xff]
    %v176 = vld [vmem:[%s3 + $0xf0] sm:$0xff]
    %v177 = vld [vmem:[%s3 + $0xf8] sm:$0xff]
    %v178 = vld [vmem:[%s4] sm:$0x3]
    %v180 = vlaneseq
    %v181 = vshrl.u32 %v180, 7
    %v182 = vsub.s32 0, %v181
    %v183 = vrot.slane %v178, %v182
    %v184 = vlaneseq
    %v185 = vshrl.u32 %v184, 7
    %v186 = vsub.s32 1, %v185
    %v187 = vrot.slane %v178, %v186
    %v222 = vunpack.c.l.b16 %v146
    %v223 = vunpack.c.h.b16 %v146
    %v224 = vunpack.c.l.b16 %v147
    %v225 = vunpack.c.h.b16 %v147
    %v226 = vunpack.c.l.b16 %v148
    %v227 = vunpack.c.h.b16 %v148
    %v228 = vunpack.c.l.b16 %v149
    %v229 = vunpack.c.h.b16 %v149
    %v230 = vunpack.c.l.b16 %v150
    %v231 = vunpack.c.h.b16 %v150
    %v232 = vunpack.c.l.b16 %v151
    %v233 = vunpack.c.h.b16 %v151
    %v234 = vunpack.c.l.b16 %v152
    %v235 = vunpack.c.h.b16 %v152
    %v236 = vunpack.c.l.b16 %v153
    %v237 = vunpack.c.h.b16 %v153
    %v238 = vunpack.c.l.b16 %v154
    %v239 = vunpack.c.h.b16 %v154
    %v240 = vunpack.c.l.b16 %v155
    %v241 = vunpack.c.h.b16 %v155
    %v242 = vunpack.c.l.b16 %v156
    %v243 = vunpack.c.h.b16 %v156
    %v244 = vunpack.c.l.b16 %v157
    %v245 = vunpack.c.h.b16 %v157
    %v246 = vunpack.c.l.b16 %v158
    %v247 = vunpack.c.h.b16 %v158
    %v248 = vunpack.c.l.b16 %v159
    %v249 = vunpack.c.h.b16 %v159
    %v250 = vunpack.c.l.b16 %v160
    %v251 = vunpack.c.h.b16 %v160
    %v252 = vunpack.c.l.b16 %v161
    %v253 = vunpack.c.h.b16 %v161
    %v254 = vunpack.c.l.b16 %v162
    %v255 = vunpack.c.h.b16 %v162
    %v256 = vunpack.c.l.b16 %v163
    %v257 = vunpack.c.h.b16 %v163
    %v258 = vunpack.c.l.b16 %v164
    %v259 = vunpack.c.h.b16 %v164
    %v260 = vunpack.c.l.b16 %v165
    %v261 = vunpack.c.h.b16 %v165
    %v262 = vunpack.c.l.b16 %v166
    %v263 = vunpack.c.h.b16 %v166
    %v264 = vunpack.c.l.b16 %v167
    %v265 = vunpack.c.h.b16 %v167
    %v266 = vunpack.c.l.b16 %v168
    %v267 = vunpack.c.h.b16 %v168
    %v268 = vunpack.c.l.b16 %v169
    %v269 = vunpack.c.h.b16 %v169
    %v270 = vunpack.c.l.b16 %v170
    %v271 = vunpack.c.h.b16 %v170
    %v272 = vunpack.c.l.b16 %v171
    %v273 = vunpack.c.h.b16 %v171
    %v274 = vunpack.c.l.b16 %v172
    %v275 = vunpack.c.h.b16 %v172
    %v276 = vunpack.c.l.b16 %v173
    %v277 = vunpack.c.h.b16 %v173
    %v278 = vunpack.c.l.b16 %v174
    %v279 = vunpack.c.h.b16 %v174
    %v280 = vunpack.c.l.b16 %v175
    %v281 = vunpack.c.h.b16 %v175
    %v282 = vunpack.c.l.b16 %v176
    %v283 = vunpack.c.h.b16 %v176
    %v284 = vunpack.c.l.b16 %v177
    %v285 = vunpack.c.h.b16 %v177
    %v286 = vpack.c.b16 %v224, %v222
    %v287 = vpack.c.b16 %v225, %v223
    %v288 = vpack.c.b16 %v228, %v226
    %v289 = vpack.c.b16 %v229, %v227
    %v290 = vpack.c.b16 %v232, %v230
    %v291 = vpack.c.b16 %v233, %v231
    %v292 = vpack.c.b16 %v236, %v234
    %v293 = vpack.c.b16 %v237, %v235
    %v294 = vpack.c.b16 %v240, %v238
    %v295 = vpack.c.b16 %v241, %v239
    %v296 = vpack.c.b16 %v244, %v242
    %v297 = vpack.c.b16 %v245, %v243
    %v298 = vpack.c.b16 %v248, %v246
    %v299 = vpack.c.b16 %v249, %v247
    %v300 = vpack.c.b16 %v252, %v250
    %v301 = vpack.c.b16 %v253, %v251
    %v302 = vpack.c.b16 %v256, %v254
    %v303 = vpack.c.b16 %v257, %v255
    %v304 = vpack.c.b16 %v260, %v258
    %v305 = vpack.c.b16 %v261, %v259
    %v306 = vpack.c.b16 %v264, %v262
    %v307 = vpack.c.b16 %v265, %v263
    %v308 = vpack.c.b16 %v268, %v266
    %v309 = vpack.c.b16 %v269, %v267
    %v310 = vpack.c.b16 %v272, %v270
    %v311 = vpack.c.b16 %v273, %v271
    %v312 = vpack.c.b16 %v276, %v274
    %v313 = vpack.c.b16 %v277, %v275
    %v314 = vpack.c.b16 %v280, %v278
    %v315 = vpack.c.b16 %v281, %v279
    %v316 = vpack.c.b16 %v284, %v282
    %v317 = vpack.c.b16 %v285, %v283
    %350 = vmatprep.subr.bf16.mxu0 %v287
    %351 = vmatpush1.bf16.msra.mxu0 %v286
    %352 = vmatprep.subr.bf16.mxu0 %v289
    %353 = vmatpush1.bf16.msra.mxu0 %v288
    %354 = vmatprep.subr.bf16.mxu0 %v291
    %355 = vmatpush1.bf16.msra.mxu0 %v290
    %356 = vmatprep.subr.bf16.mxu0 %v293
    %357 = vmatpush1.bf16.msra.mxu0 %v292
    %358 = vmatprep.subr.bf16.mxu0 %v295
    %359 = vmatpush1.bf16.msra.mxu0 %v294
    %360 = vmatprep.subr.bf16.mxu0 %v297
    %361 = vmatpush1.bf16.msra.mxu0 %v296
    %362 = vmatprep.subr.bf16.mxu0 %v299
    %363 = vmatpush1.bf16.msra.mxu0 %v298
    %364 = vmatprep.subr.bf16.mxu0 %v301
    %365 = vmatpush1.bf16.msra.mxu0 %v300
    %366 = vmatprep.subr.bf16.mxu0 %v303
    %367 = vmatpush1.bf16.msra.mxu0 %v302
    %368 = vmatprep.subr.bf16.mxu0 %v305
    %369 = vmatpush1.bf16.msra.mxu0 %v304
    %370 = vmatprep.subr.bf16.mxu0 %v307
    %371 = vmatpush1.bf16.msra.mxu0 %v306
    %372 = vmatprep.subr.bf16.mxu0 %v309
    %373 = vmatpush1.bf16.msra.mxu0 %v308
    %374 = vmatprep.subr.bf16.mxu0 %v311
    %375 = vmatpush1.bf16.msra.mxu0 %v310
    %376 = vmatprep.subr.bf16.mxu0 %v313
    %377 = vmatpush1.bf16.msra.mxu0 %v312
    %378 = vmatprep.subr.bf16.mxu0 %v315
    %379 = vmatpush1.bf16.msra.mxu0 %v314
    %380 = vmatprep.subr.bf16.mxu0 %v317
    %381 = vmatpush1.bf16.msra.mxu0 %v316
    %382 = vmatprep.mubr.bf16.mxu0 %v145
    %383 = vmatmul.mubr.bf16.gmra.mrb[0].mxu0 %v144
    %v384 = vpop.f32.mrb[0].mxu0
    %v385 = vadd.f32 %v183, %v384
    %v386 = vpop.f32.mrb[0].mxu0
    %v387 = vadd.f32 %v187, %v386
    %v388 = vpop.f32.mrb[0].mxu0
    %v389 = vpop.f32.mrb[0].mxu0
    %390 = vdwg.mxu0
    %v391 = vmax.f32 %v385, 0.0
    %v392 = vmax.f32 %v387, 0.0
    %v393 = vld [vmem:[%s5] sm:$0xff]
    %v394 = vld [vmem:[%s5 + $0x8] sm:$0xff]
    %v395 = vld [vmem:[%s5 + $0x10] sm:$0xff]
    %v396 = vld [vmem:[%s5 + $0x18] sm:$0xff]
    %v397 = vld [vmem:[%s5 + $0x20] sm:$0xff]
    %v398 = vld [vmem:[%s5 + $0x28] sm:$0xff]
    %v399 = vld [vmem:[%s5 + $0x30] sm:$0xff]
    %v400 = vld [vmem:[%s5 + $0x38] sm:$0xff]
    %v401 = vld [vmem:[%s5 + $0x40] sm:$0xff]
    %v402 = vld [vmem:[%s5 + $0x48] sm:$0xff]
    %v403 = vld [vmem:[%s5 + $0x50] sm:$0xff]
    %v404 = vld [vmem:[%s5 + $0x58] sm:$0xff]
    %v405 = vld [vmem:[%s5 + $0x60] sm:$0xff]
    %v406 = vld [vmem:[%s5 + $0x68] sm:$0xff]
    %v407 = vld [vmem:[%s5 + $0x70] sm:$0xff]
    %v408 = vld [vmem:[%s5 + $0x78] sm:$0xff]
    %v409 = vld [vmem:[%s5 + $0x80] sm:$0xff]
    %v410 = vld [vmem:[%s5 + $0x88] sm:$0xff]
    %v411 = vld [vmem:[%s5 + $0x90] sm:$0xff]
    %v412 = vld [vmem:[%s5 + $0x98] sm:$0xff]
    %v413 = vld [vmem:[%s5 + $0xa0] sm:$0xff]
    %v414 = vld [vmem:[%s5 + $0xa8] sm:$0xff]
    %v415 = vld [vmem:[%s5 + $0xb0] sm:$0xff]
    %v416 = vld [vmem:[%s5 + $0xb8] sm:$0xff]
    %v417 = vld [vmem:[%s5 + $0xc0] sm:$0xff]
    %v418 = vld [vmem:[%s5 + $0xc8] sm:$0xff]
    %v419 = vld [vmem:[%s5 + $0xd0] sm:$0xff]
    %v420 = vld [vmem:[%s5 + $0xd8] sm:$0xff]
    %v421 = vld [vmem:[%s5 + $0xe0] sm:$0xff]
    %v422 = vld [vmem:[%s5 + $0xe8] sm:$0xff]
    %v423 = vld [vmem:[%s5 + $0xf0] sm:$0xff]
    %v424 = vld [vmem:[%s5 + $0xf8] sm:$0xff]
    %v425 = vld [vmem:[%s6] sm:$0x1]
    %v427 = vlaneseq
    %v428 = vshrl.u32 %v427, 7
    %v429 = vsub.s32 0, %v428
    %v430 = vrot.slane %v425, %v429
    %432 = vmatprep.subr.mxu0 0.0
    %433 = vmatpush1.msra.mxu0 %v393
    %434 = vmatprep.subr.mxu0 0.0
    %435 = vmatpush1.msra.mxu0 %v394
    %436 = vmatprep.subr.mxu0 0.0
    %437 = vmatpush1.msra.mxu0 %v395
    %438 = vmatprep.subr.mxu0 0.0
    %439 = vmatpush1.msra.mxu0 %v396
    %440 = vmatprep.subr.mxu0 0.0
    %441 = vmatpush1.msra.mxu0 %v397
    %442 = vmatprep.subr.mxu0 0.0
    %443 = vmatpush1.msra.mxu0 %v398
    %444 = vmatprep.subr.mxu0 0.0
    %445 = vmatpush1.msra.mxu0 %v399
    %446 = vmatprep.subr.mxu0 0.0
    %447 = vmatpush1.msra.mxu0 %v400
    %448 = vmatprep.subr.mxu0 0.0
    %449 = vmatpush1.msra.mxu0 %v401
    %450 = vmatprep.subr.mxu0 0.0
    %451 = vmatpush1.msra.mxu0 %v402
    %452 = vmatprep.subr.mxu0 0.0
    %453 = vmatpush1.msra.mxu0 %v403
    %454 = vmatprep.subr.mxu0 0.0
    %455 = vmatpush1.msra.mxu0 %v404
    %456 = vmatprep.subr.mxu0 0.0
    %457 = vmatpush1.msra.mxu0 %v405
    %458 = vmatprep.subr.mxu0 0.0
    %459 = vmatpush1.msra.mxu0 %v406
    %460 = vmatprep.subr.mxu0 0.0
    %461 = vmatpush1.msra.mxu0 %v407
    %462 = vmatprep.subr.mxu0 0.0
    %463 = vmatpush1.msra.mxu0 %v408
    %464 = vmatprep.subr.mxu0 0.0
    %465 = vmatpush1.msra.mxu0 %v409
    %466 = vmatprep.subr.mxu0 0.0
    %467 = vmatpush1.msra.mxu0 %v410
    %468 = vmatprep.subr.mxu0 0.0
    %469 = vmatpush1.msra.mxu0 %v411
    %470 = vmatprep.subr.mxu0 0.0
    %471 = vmatpush1.msra.mxu0 %v412
    %472 = vmatprep.subr.mxu0 0.0
    %473 = vmatpush1.msra.mxu0 %v413
    %474 = vmatprep.subr.mxu0 0.0
    %475 = vmatpush1.msra.mxu0 %v414
    %476 = vmatprep.subr.mxu0 0.0
    %477 = vmatpush1.msra.mxu0 %v415
    %478 = vmatprep.subr.mxu0 0.0
    %479 = vmatpush1.msra.mxu0 %v416
    %480 = vmatprep.subr.mxu0 0.0
    %481 = vmatpush1.msra.mxu0 %v417
    %482 = vmatprep.subr.mxu0 0.0
    %483 = vmatpush1.msra.mxu0 %v418
    %484 = vmatprep.subr.mxu0 0.0
    %485 = vmatpush1.msra.mxu0 %v419
    %486 = vmatprep.subr.mxu0 0.0
    %487 = vmatpush1.msra.mxu0 %v420
    %488 = vmatprep.subr.mxu0 0.0
    %489 = vmatpush1.msra.mxu0 %v421
    %490 = vmatprep.subr.mxu0 0.0
    %491 = vmatpush1.msra.mxu0 %v422
    %492 = vmatprep.subr.mxu0 0.0
    %493 = vmatpush1.msra.mxu0 %v423
    %494 = vmatprep.subr.mxu0 0.0
    %495 = vmatpush1.msra.mxu0 %v424
    %496 = vmatprep.mubr.f32.mxu0 %v392
    %497 = vmatmul.mubr.f32.gmra.mrb[0].mxu0 %v391
    %v498 = vpop.f32.mrb[0].mxu0
    %v499 = vadd.f32 %v430, %v498
    %v500 = vpop.f32.mrb[0].mxu0
    %501 = vdwg.mxu0
    %v502 = vtanh.pop %v499
    %v503 = vld [vmem:[%s7] sm:$0x1]
    %v505 = vlaneseq
    %v506 = vshrl.u32 %v505, 7
    %v507 = vsub.s32 0, %v506
    %v508 = vrot.slane %v503, %v507
    %v510 = vmul.f32 %v502, %v508
    %v511 = vld [vmem:[%s8] sm:$0x1]
    %v513 = vlaneseq
    %v514 = vshrl.u32 %v513, 7
    %v515 = vsub.s32 0, %v514
    %v516 = vrot.slane %v511, %v515
    %v518 = vadd.f32 %v510, %v516
    %vm519 = vcmask 72704
    %520 = vst.msk [vmem:[#allocation5] sm:$0xff] %vm519, %v518
    // Predicated region
    $region42: #{actor_forward.1} parent=1 // pred_check
      _
    $region43: #{actor_forward.1} parent=1 // pred_check_branch
      %522 = sbr.rel (0) target = $region45
    $region44: #{actor_forward.1} parent=1 // pred_region
      %s524 = ssub.s32 128, 128
      %525 = vsyncadd [#allocation4], %s524
      %s527 = sshll.u32 [#allocation5], 4
      %s528 = int_to_ptr.vmem [resolvable:$true] %s527
      %530 = dma.vmem_to_hbm [thread:$0]  %s528, 128, %s9, [#allocation4]
    $region45: #{actor_forward.1} parent=1 // pred_fallthru
      _
    // Predicated region
    $region46: #{actor_forward.1} parent=1 // pred_check
      _
    $region47: #{actor_forward.1} parent=1 // pred_check_branch
      %532 = sbr.rel (0) target = $region49
    $region48: #{actor_forward.1} parent=1 // pred_region
      %533 = dma.done [#allocation4], 128
    $region49: #{actor_forward.1} parent=1 // pred_fallthru
      _
    %534 = vsyncpa [#allocation3], 1
    %535 = vsyncpa [#allocation4], 1

</llo_original>
